<compile_context>
chip_gen: v7x
topology: tpu7x:2x2x1
jax: 0.10.0
libtpu: 0.0.40
codegen_flags: <defaults>
</compile_context>

<pallas_src>
import jax
import jax.numpy as jnp
from jax.experimental import pallas as pl
from jax.experimental.pallas import tpu as pltpu

LANE = 128      # lane width (last dim)
SUBLANE = 8     # sublane width (second-to-last dim)


def _round_up(n, m):
    return ((n + m - 1) // m) * m


def _next_pow2(n):
    p = 1
    while p < n:
        p *= 2
    return p


def packed_affine_kernel(x_ref, w_ref, b_ref, o_ref):
    # One MXU matmul + one VPU bias add; all operands lane-dense in VMEM.
    o_ref[...] = (
        jnp.dot(x_ref[...], w_ref[...], preferred_element_type=jnp.float32)
        + b_ref[...]
    ).astype(o_ref.dtype)


def prepare_blob_params(params):
    """Fold the 3 affine layers and build lane-packed constants.

    Called ONCE per parameter set (hoisted out of the per-call path).
    """
    w1, b1, w2, b2, w3, b3 = params
    # No nonlinearities => the whole stack is a single affine map.
    w_eff = w1 @ w2 @ w3                      # (in_f, out_f)
    b_eff = b1 @ w2 @ w3 + b2 @ w3 + b3       # (1, out_f)

    in_f, out_f = int(w_eff.shape[0]), int(w_eff.shape[1])
    cell = _next_pow2(max(in_f, out_f))       # lanes reserved per logical row
    pack = max(1, LANE // cell)               # logical rows packed per lane-row
    width = pack * cell                       # packed feature width (128 when cell <= 128)

    # Block-diagonal packed weight: kron(I_pack, w_cell); lane-tiled bias.
    w_cell = jnp.zeros((cell, cell), jnp.float32).at[:in_f, :out_f].set(w_eff)
    w_big = jnp.kron(jnp.eye(pack, dtype=jnp.float32), w_cell)     # (width, width)
    b_cell = jnp.zeros((1, cell), jnp.float32).at[:, :out_f].set(b_eff)
    b_big = jnp.tile(b_cell, (1, pack))                            # (1, width)

    return dict(
        w_eff=w_eff, b_eff=b_eff, w_big=w_big, b_big=b_big,
        meta=dict(in_f=in_f, out_f=out_f, cell=cell, pack=pack, width=width),
    )


def blob_model_forward(x, prepared, *, block_rows=1024, min_pallas_batch=4096,
                       force_pallas=False):
    """Forward pass of BlobModel: ((x@W1+b1)@W2+b2)@W3+b3 (folded to one affine)."""
    meta = prepared["meta"]
    in_f, out_f = meta["in_f"], meta["out_f"]
    cell, pack, width = meta["cell"], meta["pack"], meta["width"]
    batch = x.shape[0]

    # Tiny batches: a plain fused XLA dot+add is strictly faster than one grid
    # step of Pallas fixed overhead plus pad/reshape traffic.
    if not force_pallas and batch < min_pallas_batch:
        return x @ prepared["w_eff"] + prepared["b_eff"]

    # --- lane-pack x: `pack` logical rows per 128-lane row -------------------
    batch_pad = _round_up(batch, pack)
    pad_rows = batch_pad - batch
    pad_cols = cell - in_f
    if pad_rows or pad_cols:
        # Only materialized when batch % pack != 0 or in_f isn't a power of 2;
        # no-op for the common case.
        x = jnp.pad(x, ((0, pad_rows), (0, pad_cols)))
    rows = batch_pad // pack
    x_packed = x.reshape(rows, width)          # contiguous reshape, no blow-up

    # --- tile the packed-row axis --------------------------------------------
    if rows <= SUBLANE:
        tm = rows                              # tm == full dim -> always legal
    else:
        # ~512 KB tiles amortize the ~0.35 us per-step overhead; >= 2 tiles when
        # there is enough work so "parallel" can shard across v7x's two TCs.
        tm = min(block_rows, _round_up(pl.cdiv(rows, 2), SUBLANE))
    grid_m = pl.cdiv(rows, tm)                 # partial last block is allowed

    cost = pl.CostEstimate(
        flops=2 * rows * width * width,
        transcendentals=0,
        bytes_accessed=4 * (2 * rows * width + width * width + width),
    )

    out_packed = pl.pallas_call(
        packed_affine_kernel,
        out_shape=jax.ShapeDtypeStruct((rows, width), jnp.float32),
        grid=(grid_m,),
        in_specs=[
            pl.BlockSpec((tm, width), lambda i: (i, 0)),      # x tile (pipelined)
            pl.BlockSpec((width, width), lambda i: (0, 0)),   # packed weight (resident)
            pl.BlockSpec((1, width), lambda i: (0, 0)),       # packed bias (resident)
        ],
        out_specs=pl.BlockSpec((tm, width), lambda i: (i, 0)),
        compiler_params=pltpu.CompilerParams(
            dimension_semantics=("parallel",),
        ),
        cost_estimate=cost,
    )(x_packed, prepared["w_big"], prepared["b_big"])

    # unpack: (rows, pack*cell) -> (batch_pad, cell) -> (batch, out_f)
    return out_packed.reshape(batch_pad, cell)[:batch, :out_f]


def init_params(key, input_features, output_features, hidden_units=8):
    """PyTorch-style uniform(+/- 1/sqrt(fan_in)) init.

    Weights stored as (in_features, out_features), biases as (1, out_features).
    """
    dims = [(input_features, hidden_units),
            (hidden_units, hidden_units),
            (hidden_units, output_features)]
    params = []
    for (fan_in, fan_out) in dims:
        key, kw, kb = jax.random.split(key, 3)
        bound = 1.0 / jnp.sqrt(jnp.float32(fan_in))
        w = jax.random.uniform(kw, (fan_in, fan_out), jnp.float32, -bound, bound)
        b = jax.random.uniform(kb, (1, fan_out), jnp.float32, -bound, bound)
        params.extend([w, b])
    return tuple(params)


if __name__ == "__main__":
    key = jax.random.PRNGKey(0)

    input_features = 4
    hidden_units = 8
    output_features = 3

    key, kp = jax.random.split(key)
    params = init_params(kp, input_features, output_features, hidden_units)
    prepared = prepare_blob_params(params)     # folding + packing: done ONCE

    w1, b1, w2, b2, w3, b3 = params

    def reference(xx):
        # un-fused 3-layer reference, matching the PyTorch module layer-by-layer
        return ((xx @ w1 + b1) @ w2 + b2) @ w3 + b3

    # (a) tiny shipped shape, forced through the Pallas kernel
    key, kx = jax.random.split(key)
    x_small = jax.random.normal(kx, (8, input_features), jnp.float32)
    out_small = jax.block_until_ready(
        blob_model_forward(x_small, prepared, force_pallas=True))
    assert out_small.shape == (8, output_features)
    assert jnp.allclose(out_small, reference(x_small), atol=1e-4, rtol=1e-4)

    # (b) slightly larger batch exercising lane-packing with no row padding
    key, kx2 = jax.random.split(key)
    x_med = jax.random.normal(kx2, (256, input_features), jnp.float32)
    out_med = jax.block_until_ready(
        blob_model_forward(x_med, prepared, force_pallas=True))
    assert out_med.shape == (256, output_features)
    assert jnp.allclose(out_med, reference(x_med), atol=1e-4, rtol=1e-4)

    # (c) default dispatch for tiny batches skips Pallas (plain fused XLA affine)
    out_xla = jax.block_until_ready(blob_model_forward(x_small, prepared))
    assert jnp.allclose(out_xla, reference(x_small), atol=1e-4, rtol=1e-4)

    print("KERNEL_OK")
</pallas_src>

<mosaic_0001>
module attributes {stable_mosaic.version = 11 : i64} {
  func.func @packed_affine_kernel(%arg0: i32, %arg1: memref<1x128xf32, #tpu.memory_space<vmem>>, %arg2: memref<128x128xf32, #tpu.memory_space<vmem>>, %arg3: memref<1x128xf32, #tpu.memory_space<vmem>>, %arg4: memref<1x128xf32, #tpu.memory_space<vmem>>) attributes {dimension_semantics = [#tpu.dimension_semantics<parallel>], iteration_bounds = array<i64: 1>, scalar_prefetch = 0 : i64, scratch_operands = 0 : i64, tpu.core_type = #tpu.core_type<tc>, window_params = [{transform_indices = @transform_0, window_bounds = array<i64: 1, 128>}, {pipeline_mode = #tpu.pipeline_mode<synchronous>, transform_indices = @transform_1, window_bounds = array<i64: 128, 128>}, {pipeline_mode = #tpu.pipeline_mode<synchronous>, transform_indices = @transform_2, window_bounds = array<i64: 1, 128>}, {transform_indices = @transform_3, window_bounds = array<i64: 1, 128>}]} {
    %c0 = arith.constant 0 : index
    %c0_0 = arith.constant 0 : index
    %0 = vector.load %arg1[%c0, %c0_0] : memref<1x128xf32, #tpu.memory_space<vmem>>, vector<1x128xf32>
    %c0_1 = arith.constant 0 : index
    %c0_2 = arith.constant 0 : index
    %1 = vector.load %arg2[%c0_1, %c0_2] : memref<128x128xf32, #tpu.memory_space<vmem>>, vector<128x128xf32>
    %cst = arith.constant dense<0.000000e+00> : vector<1x128xf32>
    %2 = tpu.matmul %0, %1, %cst {dimension_numbers = #tpu.dot_dimension_numbers<[1], [0], [0], [1], [0, 0, 1, 1], [], []>} : vector<1x128xf32>, vector<128x128xf32>, vector<1x128xf32> -> vector<1x128xf32>
    %c0_3 = arith.constant 0 : index
    %c0_4 = arith.constant 0 : index
    %3 = vector.load %arg3[%c0_3, %c0_4] : memref<1x128xf32, #tpu.memory_space<vmem>>, vector<1x128xf32>
    %4 = arith.addf %2, %3 : vector<1x128xf32>
    %c0_5 = arith.constant 0 : index
    %c0_6 = arith.constant 0 : index
    %5 = vector.load %arg4[%c0_5, %c0_6] : memref<1x128xf32, #tpu.memory_space<vmem>>, vector<1x128xf32>
    tpu.vector_store %arg4[%c0_5, %c0_6], %4 {strides = array<i32>} : memref<1x128xf32, #tpu.memory_space<vmem>>, vector<1x128xf32>,
    return
  }
  func.func @transform_0(%arg0: i32) -> (i32, i32) {
    %c0_i32 = arith.constant 0 : i32
    %c0_i32_0 = arith.constant 0 : i32
    return %arg0, %c0_i32 : i32, i32
  }
  func.func @transform_1(%arg0: i32) -> (i32, i32) {
    %c0_i32 = arith.constant 0 : i32
    %c0_i32_0 = arith.constant 0 : i32
    %c0_i32_1 = arith.constant 0 : i32
    return %c0_i32, %c0_i32_0 : i32, i32
  }
  func.func @transform_2(%arg0: i32) -> (i32, i32) {
    %c0_i32 = arith.constant 0 : i32
    %c0_i32_0 = arith.constant 0 : i32
    %c0_i32_1 = arith.constant 0 : i32
    return %c0_i32, %c0_i32_0 : i32, i32
  }
  func.func @transform_3(%arg0: i32) -> (i32, i32) {
    %c0_i32 = arith.constant 0 : i32
    %c0_i32_0 = arith.constant 0 : i32
    return %arg0, %c0_i32 : i32, i32
  }
}

</mosaic_0001>

<llo_original>
// kernel: tpu_custom_call.1
$region0: #{tpu_custom_call.1}
  #allocation0 [shape = 'u32[]', space=smem, size = 0x4, offset = 0x4, fixed_abs, tag = 'smem constant byte address 0x4 - core index']
  #allocation1 [shape = 'u32[144,128]{1,0:T(1,128)}', space=vmem, size = 0x12000, scoped, tag = 'internal scratch']
  %s0 = inlined_call_operand.hbm [shape: f32[1,128], index: 0, kind: input, shape index: {}]
  %s1 = inlined_call_operand.hbm [shape: f32[128,128], index: 1, kind: input, shape index: {}]
  %s2 = inlined_call_operand.vmem [shape: f32[1,128], index: 2, kind: input, shape index: {}]
  %s3 = inlined_call_operand.hbm [shape: f32[1,128], index: 3, kind: output, shape index: {}]
  %s4 = sld [smem:[#allocation0]]
  $region30: #{tpu_custom_call.1} parent=0
    _
  %s6 = ssub.s32 1, %s4
  %s7 = scalar_select 0, %s6, %s4
  $region1: #{tpu_custom_call.1} parent=0
    #allocation2 [shape = 'u8[512]{0}', space=vmem, size = 0x400, scoped, tag = 'input window, operand 0, single buffered']
    #allocation3 [shape = 's32[1]{0}', space=sflag, size = 0x4, scoped, tag = 'scoped memory for tpu_custom_call.1']
    #allocation4 [shape = 's32[1]{0}', space=sflag, size = 0x4, scoped, tag = 'scoped memory for tpu_custom_call.1']
    #allocation5 [shape = 'u8[65536]{0}', space=vmem, size = 0x10000, scoped, tag = 'input window, operand 1, single buffered']
    #allocation6 [shape = 's32[1]{0}', space=sflag, size = 0x4, scoped, tag = 'scoped memory for tpu_custom_call.1']
    #allocation7 [shape = 'u8[512]{0}', space=vmem, size = 0x400, scoped, tag = 'output window, operand 0, single buffered']
    %8 = vsyncpa [#allocation3], 0
    %9 = vsyncpa [#allocation6], 0
    %10 = vsyncpa [#allocation4], 0
    // Predicated region
    $region2: #{tpu_custom_call.1} parent=1 // pred_check
      _
    $region3: #{tpu_custom_call.1} parent=1 // pred_check_branch
      %12 = sbr.rel (0) target = $region5
    $region4: #{tpu_custom_call.1} parent=1 // pred_region
      %s14 = ssub.s32 16, 16
      %15 = vsyncadd [#allocation3], %s14
      %s17 = sshll.u32 [#allocation2], 4
      %s18 = int_to_ptr.vmem [resolvable:$true] %s17
      %20 = dma.hbm_to_vmem [thread:$0]  %s0, 16, %s18, [#allocation3]
    $region5: #{tpu_custom_call.1} parent=1 // pred_fallthru
      _
    // Predicated region
    $region6: #{tpu_custom_call.1} parent=1 // pred_check
      _
    $region7: #{tpu_custom_call.1} parent=1 // pred_check_branch
      %22 = sbr.rel (0) target = $region9
    $region8: #{tpu_custom_call.1} parent=1 // pred_region
      %s24 = ssub.s32 2048, 2048
      %25 = vsyncadd [#allocation6], %s24
      %s26 = sshll.u32 [#allocation5], 4
      %s27 = int_to_ptr.vmem [resolvable:$true] %s26
      %32 = dma.hbm_to_vmem [thread:$0]  %s1, 2048, %s27, [#allocation6], 128, 128, 8
    $region9: #{tpu_custom_call.1} parent=1 // pred_fallthru
      _
    // Predicated region
    $region10: #{tpu_custom_call.1} parent=1 // pred_check
      _
    $region11: #{tpu_custom_call.1} parent=1 // pred_check_branch
      %34 = sbr.rel (0) target = $region13
    $region12: #{tpu_custom_call.1} parent=1 // pred_region
      _
    $region13: #{tpu_custom_call.1} parent=1 // pred_fallthru
      _
    // Predicated region
    $region14: #{tpu_custom_call.1} parent=1 // pred_check
      _
    $region15: #{tpu_custom_call.1} parent=1 // pred_check_branch
      %36 = sbr.rel (0) target = $region17
    $region16: #{tpu_custom_call.1} parent=1 // pred_region
      %37 = dma.done [#allocation3], 16
    $region17: #{tpu_custom_call.1} parent=1 // pred_fallthru
      _
    // Predicated region
    $region18: #{tpu_custom_call.1} parent=1 // pred_check
      _
    $region19: #{tpu_custom_call.1} parent=1 // pred_check_branch
      %39 = sbr.rel (0) target = $region21
    $region20: #{tpu_custom_call.1} parent=1 // pred_region
      %40 = dma.done [#allocation6], 2048
    $region21: #{tpu_custom_call.1} parent=1 // pred_fallthru
      _
    %v41 = vld [vmem:[#allocation2] sm:$0x1]
    %v42 = vld [vmem:[#allocation5] sm:$0xff]
    %v43 = vld [vmem:[#allocation5 + $0x8] sm:$0xff]
    %v44 = vld [vmem:[#allocation5 + $0x10] sm:$0xff]
    %v45 = vld [vmem:[#allocation5 + $0x18] sm:$0xff]
    %v46 = vld [vmem:[#allocation5 + $0x20] sm:$0xff]
    %v47 = vld [vmem:[#allocation5 + $0x28] sm:$0xff]
    %v48 = vld [vmem:[#allocation5 + $0x30] sm:$0xff]
    %v49 = vld [vmem:[#allocation5 + $0x38] sm:$0xff]
    %v50 = vld [vmem:[#allocation5 + $0x40] sm:$0xff]
    %v51 = vld [vmem:[#allocation5 + $0x48] sm:$0xff]
    %v52 = vld [vmem:[#allocation5 + $0x50] sm:$0xff]
    %v53 = vld [vmem:[#allocation5 + $0x58] sm:$0xff]
    %v54 = vld [vmem:[#allocation5 + $0x60] sm:$0xff]
    %v55 = vld [vmem:[#allocation5 + $0x68] sm:$0xff]
    %v56 = vld [vmem:[#allocation5 + $0x70] sm:$0xff]
    %v57 = vld [vmem:[#allocation5 + $0x78] sm:$0xff]
    %v58 = vld [vmem:[%s2] sm:$0x1]
    %59 = vmatprep.subr.mxu0 0.0
    %60 = vmatpush1.msra.mxu0 %v42
    %61 = vmatprep.subr.mxu0 0.0
    %62 = vmatpush1.msra.mxu0 %v43
    %63 = vmatprep.subr.mxu0 0.0
    %64 = vmatpush1.msra.mxu0 %v44
    %65 = vmatprep.subr.mxu0 0.0
    %66 = vmatpush1.msra.mxu0 %v45
    %67 = vmatprep.subr.mxu0 0.0
    %68 = vmatpush1.msra.mxu0 %v46
    %69 = vmatprep.subr.mxu0 0.0
    %70 = vmatpush1.msra.mxu0 %v47
    %71 = vmatprep.subr.mxu0 0.0
    %72 = vmatpush1.msra.mxu0 %v48
    %73 = vmatprep.subr.mxu0 0.0
    %74 = vmatpush1.msra.mxu0 %v49
    %75 = vmatprep.subr.mxu0 0.0
    %76 = vmatpush1.msra.mxu0 %v50
    %77 = vmatprep.subr.mxu0 0.0
    %78 = vmatpush1.msra.mxu0 %v51
    %79 = vmatprep.subr.mxu0 0.0
    %80 = vmatpush1.msra.mxu0 %v52
    %81 = vmatprep.subr.mxu0 0.0
    %82 = vmatpush1.msra.mxu0 %v53
    %83 = vmatprep.subr.mxu0 0.0
    %84 = vmatpush1.msra.mxu0 %v54
    %85 = vmatprep.subr.mxu0 0.0
    %86 = vmatpush1.msra.mxu0 %v55
    %87 = vmatprep.subr.mxu0 0.0
    %88 = vmatpush1.msra.mxu0 %v56
    %89 = vmatprep.subr.mxu0 0.0
    %90 = vmatpush1.msra.mxu0 %v57
    %91 = vmatprep.subr.mxu0 0.0
    %92 = vmatpush1.msra.mxu0 0.0
    %93 = vmatprep.subr.mxu0 0.0
    %94 = vmatpush1.msra.mxu0 0.0
    %95 = vmatprep.subr.mxu0 0.0
    %96 = vmatpush1.msra.mxu0 0.0
    %97 = vmatprep.subr.mxu0 0.0
    %98 = vmatpush1.msra.mxu0 0.0
    %99 = vmatprep.subr.mxu0 0.0
    %100 = vmatpush1.msra.mxu0 0.0
    %101 = vmatprep.subr.mxu0 0.0
    %102 = vmatpush1.msra.mxu0 0.0
    %103 = vmatprep.subr.mxu0 0.0
    %104 = vmatpush1.msra.mxu0 0.0
    %105 = vmatprep.subr.mxu0 0.0
    %106 = vmatpush1.msra.mxu0 0.0
    %107 = vmatprep.subr.mxu0 0.0
    %108 = vmatpush1.msra.mxu0 0.0
    %109 = vmatprep.subr.mxu0 0.0
    %110 = vmatpush1.msra.mxu0 0.0
    %111 = vmatprep.subr.mxu0 0.0
    %112 = vmatpush1.msra.mxu0 0.0
    %113 = vmatprep.subr.mxu0 0.0
    %114 = vmatpush1.msra.mxu0 0.0
    %115 = vmatprep.subr.mxu0 0.0
    %116 = vmatpush1.msra.mxu0 0.0
    %117 = vmatprep.subr.mxu0 0.0
    %118 = vmatpush1.msra.mxu0 0.0
    %119 = vmatprep.subr.mxu0 0.0
    %120 = vmatpush1.msra.mxu0 0.0
    %121 = vmatprep.subr.mxu0 0.0
    %122 = vmatpush1.msra.mxu0 0.0
    %123 = vmatprep.mubr.f32.mxu0 0.0
    %124 = vmatmul.mubr.f32.gmra.mrb[0].mxu0 %v41
    %v125 = vpop.f32.mrb[0].mxu0
    %v126 = vadd.f32 %v58, %v125
    %v127 = vpop.f32.mrb[0].mxu0
    %128 = vdwg.mxu0
    %129 = vst [vmem:[#allocation7] sm:$0x1] %v126
    // Predicated region
    $region22: #{tpu_custom_call.1} parent=1 // pred_check
      _
    $region23: #{tpu_custom_call.1} parent=1 // pred_check_branch
      %131 = sbr.rel (0) target = $region25
    $region24: #{tpu_custom_call.1} parent=1 // pred_region
      %s133 = ssub.s32 16, 16
      %134 = vsyncadd [#allocation4], %s133
      %s136 = sshll.u32 [#allocation7], 4
      %s137 = int_to_ptr.vmem [resolvable:$true] %s136
      %139 = dma.vmem_to_hbm [thread:$0]  %s137, 16, %s3, [#allocation4]
    $region25: #{tpu_custom_call.1} parent=1 // pred_fallthru
      _
    // Predicated region
    $region26: #{tpu_custom_call.1} parent=1 // pred_check
      _
    $region27: #{tpu_custom_call.1} parent=1 // pred_check_branch
      %141 = sbr.rel (0) target = $region29
    $region28: #{tpu_custom_call.1} parent=1 // pred_region
      %142 = dma.done [#allocation4], 16
    $region29: #{tpu_custom_call.1} parent=1 // pred_fallthru
      _
    %143 = vsyncpa [#allocation3], 1
    %144 = vsyncpa [#allocation6], 1
    %145 = vsyncpa [#allocation4], 1

</llo_original>
